<compile_context>
chip_gen: v6e
topology: v6e:2x2x1
jax: 0.10.0
libtpu: 0.0.40
codegen_flags: <defaults>
</compile_context>

<pallas_src>
import functools

import jax
import jax.numpy as jnp
from jax.experimental import pallas as pl
from jax.experimental.pallas import tpu as pltpu

_LANE = 128


def _round_up(x, m):
    return ((x + m - 1) // m) * m


def _attention_kernel(enc_ref, dec_ref, w1_ref, w2_ref, v_ref, di_ref, uj_ref,
                      *, seq_len):
    # One grid step == one block of Bb batch elements (all padded shapes).
    Bb, Tp, Hp = enc_ref.shape
    Up = w1_ref.shape[1]

    enc = enc_ref[...]                                      # (Bb, Tp, Hp)

    # W1(encoder_out): one big (Bb*Tp, Hp) x (Hp, Up) MXU matmul.
    s1 = jnp.dot(enc.reshape(Bb * Tp, Hp), w1_ref[...],
                 preferred_element_type=jnp.float32)        # (Bb*Tp, Up)

    # W2(decoder_hidden): hoisted to a single (Bb, Hp) x (Hp, Up) matmul.
    s2 = jnp.dot(dec_ref[...], w2_ref[...],
                 preferred_element_type=jnp.float32)        # (Bb, Up)

    u = jnp.tanh(s1.reshape(Bb, Tp, Up) + s2[:, None, :])   # (Bb, Tp, Up)

    # V projection as a lane reduction so T ends up on the lane axis
    # (avoids an N=1 MXU matmul and a transpose before the uj store).
    scores = jnp.sum(u * v_ref[...][None, :, :], axis=-1)   # (Bb, Tp)

    # Returned logits (pre-softmax). Padded lanes hold junk; sliced off outside.
    uj_ref[...] = scores

    # Softmax over the (padded) time axis; mask out padded time steps.
    t_idx = jax.lax.broadcasted_iota(jnp.int32, (Bb, Tp), 1)
    logits = jnp.where(t_idx < seq_len, scores, jnp.float32(-1e30))

    m = jnp.max(logits, axis=-1, keepdims=True)
    e = jnp.exp(logits - m)
    denom = jnp.sum(e, axis=-1, keepdims=True)
    a = e * pl.reciprocal(denom, approx=True)                # (Bb, Tp)

    # Context vector: batched (1, Tp) x (Tp, Hp) contraction on the MXU.
    di = jnp.einsum("bqt,bth->bqh", a[:, None, :], enc,
                    preferred_element_type=jnp.float32)      # (Bb, 1, Hp)
    di_ref[...] = di


def lstm_attention(encoder_out, decoder_hidden, w1, w2, v, *, block_b=8):
    """encoder_out: (B, T, H); decoder_hidden: (B, H);
       w1, w2: (H, U) (torch Linear weight transposed); v: (U, 1).
       Returns (di_prime (B, H), uj (B, T))."""
    B, T, H = encoder_out.shape
    U = w1.shape[1]
    assert w1.shape == (H, U) and w2.shape == (H, U) and v.shape == (U, 1)

    f32 = jnp.float32
    Tp = _round_up(T, _LANE)
    Hp = _round_up(H, _LANE)
    Up = _round_up(U, _LANE)
    Bb = min(block_b, B)                 # batch elements per grid step
    Bp = _round_up(B, Bb)

    # Zero-pad to lane-aligned shapes (zero padding is exact for the matmuls;
    # padded time steps are masked out of the softmax inside the kernel).
    enc_p = jnp.zeros((Bp, Tp, Hp), f32).at[:B, :T, :H].set(encoder_out.astype(f32))
    dec_p = jnp.zeros((Bp, Hp), f32).at[:B, :H].set(decoder_hidden.astype(f32))
    w1_p = jnp.zeros((Hp, Up), f32).at[:H, :U].set(w1.astype(f32))
    w2_p = jnp.zeros((Hp, Up), f32).at[:H, :U].set(w2.astype(f32))
    v_p = jnp.zeros((1, Up), f32).at[0, :U].set(v[:, 0].astype(f32))

    grid = (Bp // Bb,)
    kernel = functools.partial(_attention_kernel, seq_len=T)

    di3, uj2 = pl.pallas_call(
        kernel,
        out_shape=(
            jax.ShapeDtypeStruct((Bp, 1, Hp), f32),
            jax.ShapeDtypeStruct((Bp, Tp), f32),
        ),
        grid_spec=pltpu.PrefetchScalarGridSpec(
            num_scalar_prefetch=0,
            grid=grid,
            in_specs=[
                pl.BlockSpec((Bb, Tp, Hp), lambda b: (b, 0, 0)),  # encoder_out
                pl.BlockSpec((Bb, Hp), lambda b: (b, 0)),         # decoder_hidden
                pl.BlockSpec((Hp, Up), lambda b: (0, 0)),         # W1^T (resident)
                pl.BlockSpec((Hp, Up), lambda b: (0, 0)),         # W2^T (resident)
                pl.BlockSpec((1, Up), lambda b: (0, 0)),          # V^T row (resident)
            ],
            out_specs=[
                pl.BlockSpec((Bb, 1, Hp), lambda b: (b, 0, 0)),   # di_prime
                pl.BlockSpec((Bb, Tp), lambda b: (b, 0)),         # uj logits
            ],
        ),
        compiler_params=pltpu.CompilerParams(
            dimension_semantics=("parallel",),
        ),
    )(enc_p, dec_p, w1_p, w2_p, v_p)

    return di3[:B, 0, :H], uj2[:B, :T]


def _reference(encoder_out, decoder_hidden, w1, w2, v):
    uj = jnp.tanh(encoder_out @ w1 + (decoder_hidden @ w2)[:, None, :]) @ v  # (B,T,1)
    aj = jax.nn.softmax(uj, axis=1)
    di = jnp.sum(aj * encoder_out, axis=1)
    return di, uj[..., 0]


if __name__ == "__main__":
    B, T, H, U = 2, 8, 32, 16

    key = jax.random.PRNGKey(0)
    k_enc, k_dec, k_w1, k_w2, k_v = jax.random.split(key, 5)

    encoder_out = jax.random.normal(k_enc, (B, T, H), dtype=jnp.float32)
    decoder_hidden = jax.random.normal(k_dec, (B, H), dtype=jnp.float32)

    # Deterministic init mimicking torch.nn.Linear: U(-1/sqrt(in), 1/sqrt(in)),
    # stored pre-transposed as (in_features, out_features).
    lim_h = 1.0 / (H ** 0.5)
    lim_u = 1.0 / (U ** 0.5)
    w1 = jax.random.uniform(k_w1, (H, U), jnp.float32, -lim_h, lim_h)
    w2 = jax.random.uniform(k_w2, (H, U), jnp.float32, -lim_h, lim_h)
    v = jax.random.uniform(k_v, (U, 1), jnp.float32, -lim_u, lim_u)

    di_prime, uj = lstm_attention(encoder_out, decoder_hidden, w1, w2, v)
    jax.block_until_ready((di_prime, uj))

    di_ref, uj_ref = _reference(encoder_out, decoder_hidden, w1, w2, v)
    assert di_prime.shape == (B, H) and uj.shape == (B, T)
    # uj is pre-softmax and unaffected by the approximate reciprocal.
    assert jnp.allclose(uj, uj_ref, atol=1e-4, rtol=1e-4)
    # di uses pl.reciprocal(approx=True) for the softmax denominator.
    assert jnp.allclose(di_prime, di_ref, atol=2e-3, rtol=2e-3)

    print("KERNEL_OK")
</pallas_src>

<mosaic_0001>
module attributes {stable_mosaic.version = 11 : i64} {
  func.func @_attention_kernel(%arg0: i32, %arg1: memref<2x128x128xf32, #tpu.memory_space<vmem>>, %arg2: memref<2x128xf32, #tpu.memory_space<vmem>>, %arg3: memref<128x128xf32, #tpu.memory_space<vmem>>, %arg4: memref<128x128xf32, #tpu.memory_space<vmem>>, %arg5: memref<1x128xf32, #tpu.memory_space<vmem>>, %arg6: memref<2x1x128xf32, #tpu.memory_space<vmem>>, %arg7: memref<2x128xf32, #tpu.memory_space<vmem>>) attributes {dimension_semantics = [#tpu.dimension_semantics<parallel>], iteration_bounds = array<i64: 1>, scalar_prefetch = 0 : i64, scratch_operands = 0 : i64, tpu.core_type = #tpu.core_type<tc>, window_params = [{transform_indices = @transform_0, window_bounds = array<i64: 2, 128, 128>}, {transform_indices = @transform_1, window_bounds = array<i64: 2, 128>}, {pipeline_mode = #tpu.pipeline_mode<synchronous>, transform_indices = @transform_2, window_bounds = array<i64: 128, 128>}, {pipeline_mode = #tpu.pipeline_mode<synchronous>, transform_indices = @transform_3, window_bounds = array<i64: 128, 128>}, {pipeline_mode = #tpu.pipeline_mode<synchronous>, transform_indices = @transform_4, window_bounds = array<i64: 1, 128>}, {transform_indices = @transform_5, window_bounds = array<i64: 2, 1, 128>}, {transform_indices = @transform_6, window_bounds = array<i64: 2, 128>}]} {
    %c0 = arith.constant 0 : index
    %c0_0 = arith.constant 0 : index
    %c0_1 = arith.constant 0 : index
    %0 = vector.load %arg1[%c0, %c0_0, %c0_1] : memref<2x128x128xf32, #tpu.memory_space<vmem>>, vector<2x128x128xf32>
    %1 = vector.shape_cast %0 : vector<2x128x128xf32> to vector<256x128xf32>
    %c0_2 = arith.constant 0 : index
    %c0_3 = arith.constant 0 : index
    %2 = vector.load %arg3[%c0_2, %c0_3] : memref<128x128xf32, #tpu.memory_space<vmem>>, vector<128x128xf32>
    %cst = arith.constant dense<0.000000e+00> : vector<256x128xf32>
    %3 = tpu.matmul %1, %2, %cst {dimension_numbers = #tpu.dot_dimension_numbers<[1], [0], [0], [1], [0, 0, 1, 1], [], []>} : vector<256x128xf32>, vector<128x128xf32>, vector<256x128xf32> -> vector<256x128xf32>
    %c0_4 = arith.constant 0 : index
    %c0_5 = arith.constant 0 : index
    %4 = vector.load %arg2[%c0_4, %c0_5] : memref<2x128xf32, #tpu.memory_space<vmem>>, vector<2x128xf32>
    %c0_6 = arith.constant 0 : index
    %c0_7 = arith.constant 0 : index
    %5 = vector.load %arg4[%c0_6, %c0_7] : memref<128x128xf32, #tpu.memory_space<vmem>>, vector<128x128xf32>
    %cst_8 = arith.constant dense<0.000000e+00> : vector<2x128xf32>
    %6 = tpu.matmul %4, %5, %cst_8 {dimension_numbers = #tpu.dot_dimension_numbers<[1], [0], [0], [1], [0, 0, 1, 1], [], []>} : vector<2x128xf32>, vector<128x128xf32>, vector<2x128xf32> -> vector<2x128xf32>
    %7 = vector.shape_cast %3 : vector<256x128xf32> to vector<2x128x128xf32>
    %8 = vector.shape_cast %6 : vector<2x128xf32> to vector<2x1x128xf32>
    %9 = vector.broadcast %8 : vector<2x1x128xf32> to vector<2x128x128xf32>
    %10 = arith.addf %7, %9 : vector<2x128x128xf32>
    %11 = math.tanh %10 : vector<2x128x128xf32>
    %c0_9 = arith.constant 0 : index
    %c0_10 = arith.constant 0 : index
    %12 = vector.load %arg5[%c0_9, %c0_10] : memref<1x128xf32, #tpu.memory_space<vmem>>, vector<1x128xf32>
    %13 = vector.shape_cast %12 : vector<1x128xf32> to vector<1x1x128xf32>
    %14 = vector.broadcast %13 : vector<1x1x128xf32> to vector<2x128x128xf32>
    %15 = arith.mulf %11, %14 : vector<2x128x128xf32>
    %cst_11 = arith.constant dense<0.000000e+00> : vector<2x128xf32>
    %16 = vector.multi_reduction <add>, %15, %cst_11 [2] : vector<2x128x128xf32> to vector<2x128xf32>
    %c0_12 = arith.constant 0 : index
    %c0_13 = arith.constant 0 : index
    %17 = vector.load %arg7[%c0_12, %c0_13] : memref<2x128xf32, #tpu.memory_space<vmem>>, vector<2x128xf32>
    tpu.vector_store %arg7[%c0_12, %c0_13], %16 {strides = array<i32>} : memref<2x128xf32, #tpu.memory_space<vmem>>, vector<2x128xf32>,
    %18 = tpu.iota {dimensions = array<i32: 1>} : vector<2x128xi32>
    %c8_i32 = arith.constant 8 : i32
    %19 = vector.broadcast %c8_i32 : i32 to vector<2x128xi32>
    %20 = arith.cmpi slt, %18, %19 : vector<2x128xi32>
    %cst_14 = arith.constant -1.000000e+30 : f32
    %21 = vector.broadcast %cst_14 : f32 to vector<2x128xf32>
    %22 = arith.select %20, %16, %21 : vector<2x128xi1>, vector<2x128xf32>
    %cst_15 = arith.constant dense<0xFF800000> : vector<2xf32>
    %23 = vector.multi_reduction <maximumf>, %22, %cst_15 [1] : vector<2x128xf32> to vector<2xf32>
    %24 = vector.shape_cast %23 : vector<2xf32> to vector<2x1xf32>
    %25 = vector.broadcast %24 : vector<2x1xf32> to vector<2x128xf32>
    %26 = arith.subf %22, %25 : vector<2x128xf32>
    %27 = math.exp %26 : vector<2x128xf32>
    %cst_16 = arith.constant dense<0.000000e+00> : vector<2xf32>
    %28 = vector.multi_reduction <add>, %27, %cst_16 [1] : vector<2x128xf32> to vector<2xf32>
    %29 = vector.shape_cast %28 : vector<2xf32> to vector<2x1xf32>
    %30 = tpu.reciprocal %29 {approx = true} : vector<2x1xf32> -> vector<2x1xf32>
    %31 = vector.broadcast %30 : vector<2x1xf32> to vector<2x128xf32>
    %32 = arith.mulf %27, %31 : vector<2x128xf32>
    %33 = vector.shape_cast %32 : vector<2x128xf32> to vector<2x1x128xf32>
    "tpu.trace_start"() <{level = 10 : i32, message = "bqt,bth->bqh"}> : () -> ()
    %cst_17 = arith.constant dense<0.000000e+00> : vector<2x1x128xf32>
    %34 = tpu.matmul %33, %0, %cst_17 {dimension_numbers = #tpu.dot_dimension_numbers<[2], [1], [1], [2], [0, 0, 0, 1, 1, 2], [0], [0]>} : vector<2x1x128xf32>, vector<2x128x128xf32>, vector<2x1x128xf32> -> vector<2x1x128xf32>
    "tpu.trace_stop"() : () -> ()
    %c0_18 = arith.constant 0 : index
    %c0_19 = arith.constant 0 : index
    %c0_20 = arith.constant 0 : index
    %35 = vector.load %arg6[%c0_18, %c0_19, %c0_20] : memref<2x1x128xf32, #tpu.memory_space<vmem>>, vector<2x1x128xf32>
    tpu.vector_store %arg6[%c0_18, %c0_19, %c0_20], %34 {strides = array<i32>} : memref<2x1x128xf32, #tpu.memory_space<vmem>>, vector<2x1x128xf32>,
    return
  }
  func.func @transform_0(%arg0: i32) -> (i32, i32, i32) {
    %c0_i32 = arith.constant 0 : i32
    %c0_i32_0 = arith.constant 0 : i32
    %c0_i32_1 = arith.constant 0 : i32
    return %arg0, %c0_i32, %c0_i32_0 : i32, i32, i32
  }
  func.func @transform_1(%arg0: i32) -> (i32, i32) {
    %c0_i32 = arith.constant 0 : i32
    %c0_i32_0 = arith.constant 0 : i32
    return %arg0, %c0_i32 : i32, i32
  }
  func.func @transform_2(%arg0: i32) -> (i32, i32) {
    %c0_i32 = arith.constant 0 : i32
    %c0_i32_0 = arith.constant 0 : i32
    %c0_i32_1 = arith.constant 0 : i32
    return %c0_i32, %c0_i32_0 : i32, i32
  }
  func.func @transform_3(%arg0: i32) -> (i32, i32) {
    %c0_i32 = arith.constant 0 : i32
    %c0_i32_0 = arith.constant 0 : i32
    %c0_i32_1 = arith.constant 0 : i32
    return %c0_i32, %c0_i32_0 : i32, i32
  }
  func.func @transform_4(%arg0: i32) -> (i32, i32) {
    %c0_i32 = arith.constant 0 : i32
    %c0_i32_0 = arith.constant 0 : i32
    %c0_i32_1 = arith.constant 0 : i32
    return %c0_i32, %c0_i32_0 : i32, i32
  }
  func.func @transform_5(%arg0: i32) -> (i32, i32, i32) {
    %c0_i32 = arith.constant 0 : i32
    %c0_i32_0 = arith.constant 0 : i32
    %c0_i32_1 = arith.constant 0 : i32
    return %arg0, %c0_i32, %c0_i32_0 : i32, i32, i32
  }
  func.func @transform_6(%arg0: i32) -> (i32, i32) {
    %c0_i32 = arith.constant 0 : i32
    %c0_i32_0 = arith.constant 0 : i32
    return %arg0, %c0_i32 : i32, i32
  }
}

</mosaic_0001>

<llo_original>
// kernel: tpu_custom_call.1
$region0: #{tpu_custom_call.1}
  #allocation0 [shape = 'u32[]', space=smem, size = 0x4, offset = 0x4, fixed_abs, tag = 'smem constant byte address 0x4 - core index']
  #allocation1 [shape = 'u32[144,128]{1,0:T(1,128)}', space=vmem, size = 0x12000, scoped, tag = 'internal scratch']
  %s0 = inlined_call_operand.hbm [shape: f32[2,128,128], index: 0, kind: input, shape index: {}]
  %s1 = inlined_call_operand.hbm [shape: f32[2,128], index: 1, kind: input, shape index: {}]
  %s2 = inlined_call_operand.hbm [shape: f32[128,128], index: 2, kind: input, shape index: {}]
  %s3 = inlined_call_operand.hbm [shape: f32[128,128], index: 3, kind: input, shape index: {}]
  %s4 = inlined_call_operand.vmem [shape: f32[1,128], index: 4, kind: input, shape index: {}]
  %s5 = inlined_call_operand.hbm [shape: f32[2,1,128], index: 5, kind: output, shape index: {0}]
  %s6 = inlined_call_operand.hbm [shape: f32[2,128], index: 6, kind: output, shape index: {1}]
  %7 = xla_tuple %s5, %s6
  %s8 = sld [smem:[#allocation0]]
  $region54: #{tpu_custom_call.1} parent=0
    _
  %s10 = ssub.s32 1, %s8
  %s11 = scalar_select 0, %s10, %s8
  $region1: #{tpu_custom_call.1} parent=0
    #allocation2 [shape = 'u8[131072]{0}', space=vmem, size = 0x20000, scoped, tag = 'input window, operand 0, single buffered']
    #allocation3 [shape = 's32[1]{0}', space=sflag, size = 0x4, scoped, tag = 'scoped memory for tpu_custom_call.1']
    #allocation4 [shape = 's32[1]{0}', space=sflag, size = 0x4, scoped, tag = 'scoped memory for tpu_custom_call.1']
    #allocation5 [shape = 'u8[1024]{0}', space=vmem, size = 0x400, scoped, tag = 'input window, operand 1, single buffered']
    #allocation6 [shape = 's32[1]{0}', space=sflag, size = 0x4, scoped, tag = 'scoped memory for tpu_custom_call.1']
    #allocation7 [shape = 'u8[65536]{0}', space=vmem, size = 0x10000, scoped, tag = 'input window, operand 2, single buffered']
    #allocation8 [shape = 'u8[65536]{0}', space=vmem, size = 0x10000, scoped, tag = 'input window, operand 3, single buffered']
    #allocation9 [shape = 's32[1]{0}', space=sflag, size = 0x4, scoped, tag = 'scoped memory for tpu_custom_call.1']
    #allocation10 [shape = 'u8[1024]{0}', space=vmem, size = 0x400, scoped, tag = 'output window, operand 0, single buffered']
    #allocation11 [shape = 'u8[1024]{0}', space=vmem, size = 0x400, scoped, tag = 'output window, operand 1, single buffered']
    #allocation12 [shape = 's32[1]{0}', space=sflag, size = 0x4, scoped, tag = 'scoped memory for tpu_custom_call.1']
    %12 = vsyncpa [#allocation3], 0
    %13 = vsyncpa [#allocation6], 0
    %14 = vsyncpa [#allocation9], 0
    %15 = vsyncpa [#allocation4], 0
    %16 = vsyncpa [#allocation12], 0
    // Predicated region
    $region2: #{tpu_custom_call.1} parent=1 // pred_check
      _
    $region3: #{tpu_custom_call.1} parent=1 // pred_check_branch
      %18 = sbr.rel (0) target = $region5
    $region4: #{tpu_custom_call.1} parent=1 // pred_region
      %s20 = ssub.s32 4096, 4096
      %21 = vsyncadd [#allocation3], %s20
      %s22 = sshll.u32 [#allocation2], 4
      %s23 = int_to_ptr.vmem [resolvable:$true] %s22
      %28 = dma.hbm_to_vmem [thread:$0]  %s0, 4096, %s23, [#allocation3], 128, 128, 8
    $region5: #{tpu_custom_call.1} parent=1 // pred_fallthru
      _
    // Predicated region
    $region6: #{tpu_custom_call.1} parent=1 // pred_check
      _
    $region7: #{tpu_custom_call.1} parent=1 // pred_check_branch
      %30 = sbr.rel (0) target = $region9
    $region8: #{tpu_custom_call.1} parent=1 // pred_region
      %s32 = ssub.s32 32, 32
      %33 = vsyncadd [#allocation6], %s32
      %s35 = sshll.u32 [#allocation5], 4
      %s36 = int_to_ptr.vmem [resolvable:$true] %s35
      %38 = dma.hbm_to_vmem [thread:$0]  %s1, 32, %s36, [#allocation6]
    $region9: #{tpu_custom_call.1} parent=1 // pred_fallthru
      _
    // Predicated region
    $region10: #{tpu_custom_call.1} parent=1 // pred_check
      _
    $region11: #{tpu_custom_call.1} parent=1 // pred_check_branch
      %40 = sbr.rel (0) target = $region13
    $region12: #{tpu_custom_call.1} parent=1 // pred_region
      %s42 = ssub.s32 2048, 2048
      %43 = vsyncadd [#allocation6], %s42
      %s44 = sshll.u32 [#allocation7], 4
      %s45 = int_to_ptr.vmem [resolvable:$true] %s44
      %50 = dma.hbm_to_vmem [thread:$0]  %s2, 2048, %s45, [#allocation6], 128, 128, 8
    $region13: #{tpu_custom_call.1} parent=1 // pred_fallthru
      _
    // Predicated region
    $region14: #{tpu_custom_call.1} parent=1 // pred_check
      _
    $region15: #{tpu_custom_call.1} parent=1 // pred_check_branch
      %52 = sbr.rel (0) target = $region17
    $region16: #{tpu_custom_call.1} parent=1 // pred_region
      %s54 = ssub.s32 2048, 2048
      %55 = vsyncadd [#allocation9], %s54
      %s56 = sshll.u32 [#allocation8], 4
      %s57 = int_to_ptr.vmem [resolvable:$true] %s56
      %62 = dma.hbm_to_vmem [thread:$0]  %s3, 2048, %s57, [#allocation9], 128, 128, 8
    $region17: #{tpu_custom_call.1} parent=1 // pred_fallthru
      _
    // Predicated region
    $region18: #{tpu_custom_call.1} parent=1 // pred_check
      _
    $region19: #{tpu_custom_call.1} parent=1 // pred_check_branch
      %64 = sbr.rel (0) target = $region21
    $region20: #{tpu_custom_call.1} parent=1 // pred_region
      _
    $region21: #{tpu_custom_call.1} parent=1 // pred_fallthru
      _
    // Predicated region
    $region22: #{tpu_custom_call.1} parent=1 // pred_check
      _
    $region23: #{tpu_custom_call.1} parent=1 // pred_check_branch
      %66 = sbr.rel (0) target = $region25
    $region24: #{tpu_custom_call.1} parent=1 // pred_region
      %67 = dma.done [#allocation3], 4096
    $region25: #{tpu_custom_call.1} parent=1 // pred_fallthru
      _
    // Predicated region
    $region26: #{tpu_custom_call.1} parent=1 // pred_check
      _
    $region27: #{tpu_custom_call.1} parent=1 // pred_check_branch
      %69 = sbr.rel (0) target = $region29
    $region28: #{tpu_custom_call.1} parent=1 // pred_region
      %70 = dma.done [#allocation6], 32
    $region29: #{tpu_custom_call.1} parent=1 // pred_fallthru
      _
    // Predicated region
    $region30: #{tpu_custom_call.1} parent=1 // pred_check
      _
    $region31: #{tpu_custom_call.1} parent=1 // pred_check_branch
      %72 = sbr.rel (0) target = $region33
    $region32: #{tpu_custom_call.1} parent=1 // pred_region
      %73 = dma.done [#allocation6], 2048
    $region33: #{tpu_custom_call.1} parent=1 // pred_fallthru
      _
    // Predicated region
    $region34: #{tpu_custom_call.1} parent=1 // pred_check
      _
    $region35: #{tpu_custom_call.1} parent=1 // pred_check_branch
      %75 = sbr.rel (0) target = $region37
    $region36: #{tpu_custom_call.1} parent=1 // pred_region
      %76 = dma.done [#allocation9], 2048
    $region37: #{tpu_custom_call.1} parent=1 // pred_fallthru
      _
    %v77 = vld [vmem:[#allocation2] sm:$0xff]
    %v78 = vld [vmem:[#allocation2 + $0x8] sm:$0xff]
    %v79 = vld [vmem:[#allocation2 + $0x10] sm:$0xff]
    %v80 = vld [vmem:[#allocation2 + $0x18] sm:$0xff]
    %v81 = vld [vmem:[#allocation2 + $0x20] sm:$0xff]
    %v82 = vld [vmem:[#allocation2 + $0x28] sm:$0xff]
    %v83 = vld [vmem:[#allocation2 + $0x30] sm:$0xff]
    %v84 = vld [vmem:[#allocation2 + $0x38] sm:$0xff]
    %v85 = vld [vmem:[#allocation2 + $0x40] sm:$0xff]
    %v86 = vld [vmem:[#allocation2 + $0x48] sm:$0xff]
    %v87 = vld [vmem:[#allocation2 + $0x50] sm:$0xff]
    %v88 = vld [vmem:[#allocation2 + $0x58] sm:$0xff]
    %v89 = vld [vmem:[#allocation2 + $0x60] sm:$0xff]
    %v90 = vld [vmem:[#allocation2 + $0x68] sm:$0xff]
    %v91 = vld [vmem:[#allocation2 + $0x70] sm:$0xff]
    %v92 = vld [vmem:[#allocation2 + $0x78] sm:$0xff]
    %v93 = vld [vmem:[#allocation2 + $0x80] sm:$0xff]
    %v94 = vld [vmem:[#allocation2 + $0x88] sm:$0xff]
    %v95 = vld [vmem:[#allocation2 + $0x90] sm:$0xff]
    %v96 = vld [vmem:[#allocation2 + $0x98] sm:$0xff]
    %v97 = vld [vmem:[#allocation2 + $0xa0] sm:$0xff]
    %v98 = vld [vmem:[#allocation2 + $0xa8] sm:$0xff]
    %v99 = vld [vmem:[#allocation2 + $0xb0] sm:$0xff]
    %v100 = vld [vmem:[#allocation2 + $0xb8] sm:$0xff]
    %v101 = vld [vmem:[#allocation2 + $0xc0] sm:$0xff]
    %v102 = vld [vmem:[#allocation2 + $0xc8] sm:$0xff]
    %v103 = vld [vmem:[#allocation2 + $0xd0] sm:$0xff]
    %v104 = vld [vmem:[#allocation2 + $0xd8] sm:$0xff]
    %v105 = vld [vmem:[#allocation2 + $0xe0] sm:$0xff]
    %v106 = vld [vmem:[#allocation2 + $0xe8] sm:$0xff]
    %v107 = vld [vmem:[#allocation2 + $0xf0] sm:$0xff]
    %v108 = vld [vmem:[#allocation2 + $0xf8] sm:$0xff]
    %v109 = vld [vmem:[#allocation7] sm:$0xff]
    %v110 = vld [vmem:[#allocation7 + $0x8] sm:$0xff]
    %v111 = vld [vmem:[#allocation7 + $0x10] sm:$0xff]
    %v112 = vld [vmem:[#allocation7 + $0x18] sm:$0xff]
    %v113 = vld [vmem:[#allocation7 + $0x20] sm:$0xff]
    %v114 = vld [vmem:[#allocation7 + $0x28] sm:$0xff]
    %v115 = vld [vmem:[#allocation7 + $0x30] sm:$0xff]
    %v116 = vld [vmem:[#allocation7 + $0x38] sm:$0xff]
    %v117 = vld [vmem:[#allocation7 + $0x40] sm:$0xff]
    %v118 = vld [vmem:[#allocation7 + $0x48] sm:$0xff]
    %v119 = vld [vmem:[#allocation7 + $0x50] sm:$0xff]
    %v120 = vld [vmem:[#allocation7 + $0x58] sm:$0xff]
    %v121 = vld [vmem:[#allocation7 + $0x60] sm:$0xff]
    %v122 = vld [vmem:[#allocation7 + $0x68] sm:$0xff]
    %v123 = vld [vmem:[#allocation7 + $0x70] sm:$0xff]
    %v124 = vld [vmem:[#allocation7 + $0x78] sm:$0xff]
    %125 = vmatprep.subr.mxu0 0.0
    %126 = vmatpush1.msra.mxu0 %v124
    %127 = vmatprep.subr.mxu0 0.0
    %128 = vmatpush1.msra.mxu0 %v123
    %129 = vmatprep.subr.mxu0 0.0
    %130 = vmatpush1.msra.mxu0 %v122
    %131 = vmatprep.subr.mxu0 0.0
    %132 = vmatpush1.msra.mxu0 %v121
    %133 = vmatprep.subr.mxu0 0.0
    %134 = vmatpush1.msra.mxu0 %v120
    %135 = vmatprep.subr.mxu0 0.0
    %136 = vmatpush1.msra.mxu0 %v119
    %137 = vmatprep.subr.mxu0 0.0
    %138 = vmatpush1.msra.mxu0 %v118
    %139 = vmatprep.subr.mxu0 0.0
    %140 = vmatpush1.msra.mxu0 %v117
    %141 = vmatprep.subr.mxu0 0.0
    %142 = vmatpush1.msra.mxu0 %v116
    %143 = vmatprep.subr.mxu0 0.0
    %144 = vmatpush1.msra.mxu0 %v115
    %145 = vmatprep.subr.mxu0 0.0
    %146 = vmatpush1.msra.mxu0 %v114
    %147 = vmatprep.subr.mxu0 0.0
    %148 = vmatpush1.msra.mxu0 %v113
    %149 = vmatprep.subr.mxu0 0.0
    %150 = vmatpush1.msra.mxu0 %v112
    %151 = vmatprep.subr.mxu0 0.0
    %152 = vmatpush1.msra.mxu0 %v111
    %153 = vmatprep.subr.mxu0 0.0
    %154 = vmatpush1.msra.mxu0 %v110
    %155 = vmatprep.subr.mxu0 0.0
    %156 = vmatpush1.msra.mxu0 %v109
    %157 = vmatprep.subr.mxu0 0.0
    %158 = vmatpush2.msra.mxu0 0.0
    %159 = vmatprep.subr.mxu0 0.0
    %160 = vmatpush2.msra.mxu0 0.0
    %161 = vmatprep.subr.mxu0 0.0
    %162 = vmatpush2.msra.mxu0 0.0
    %163 = vmatprep.subr.mxu0 0.0
    %164 = vmatpush2.msra.mxu0 0.0
    %165 = vmatprep.subr.mxu0 0.0
    %166 = vmatpush2.msra.mxu0 0.0
    %167 = vmatprep.subr.mxu0 0.0
    %168 = vmatpush2.msra.mxu0 0.0
    %169 = vmatprep.subr.mxu0 0.0
    %170 = vmatpush2.msra.mxu0 0.0
    %171 = vmatprep.subr.mxu0 0.0
    %172 = vmatpush2.msra.mxu0 0.0
    %173 = vmatprep.subr.mxu0 0.0
    %174 = vmatpush2.msra.mxu0 0.0
    %175 = vmatprep.subr.mxu0 0.0
    %176 = vmatpush2.msra.mxu0 0.0
    %177 = vmatprep.subr.mxu0 0.0
    %178 = vmatpush2.msra.mxu0 0.0
    %179 = vmatprep.subr.mxu0 0.0
    %180 = vmatpush2.msra.mxu0 0.0
    %181 = vmatprep.subr.mxu0 0.0
    %182 = vmatpush2.msra.mxu0 0.0
    %183 = vmatprep.subr.mxu0 0.0
    %184 = vmatpush2.msra.mxu0 0.0
    %185 = vmatprep.subr.mxu0 0.0
    %186 = vmatpush2.msra.mxu0 0.0
    %187 = vmatprep.subr.mxu0 0.0
    %188 = vmatpush2.msra.mxu0 0.0
    %189 = vmatprep.mubr.f32.mxu0 0.0
    %190 = vmatmul.mubr.f32.gmra.mxu0 %v77
    %v191 = vpop.f32.mrf.mxu0
    %v192 = vadd.f32 0.0, %v191
    %v193 = vpop.f32.mrf.mxu0
    %194 = vmatprep.mubr.f32.mxu0 0.0
    %195 = vmatmul.mubr.f32.gmra.mxu0 %v78
    %v196 = vpop.f32.mrf.mxu0
    %v197 = vadd.f32 0.0, %v196
    %v198 = vpop.f32.mrf.mxu0
    %199 = vmatprep.mubr.f32.mxu0 0.0
    %200 = vmatmul.mubr.f32.gmra.mxu0 %v79
    %v201 = vpop.f32.mrf.mxu0
    %v202 = vadd.f32 0.0, %v201
    %v203 = vpop.f32.mrf.mxu0
    %204 = vmatprep.mubr.f32.mxu0 0.0
    %205 = vmatmul.mubr.f32.gmra.mxu0 %v80
    %v206 = vpop.f32.mrf.mxu0
    %v207 = vadd.f32 0.0, %v206
    %v208 = vpop.f32.mrf.mxu0
    %209 = vmatprep.mubr.f32.mxu0 0.0
    %210 = vmatmul.mubr.f32.gmra.mxu0 %v81
    %v211 = vpop.f32.mrf.mxu0
    %v212 = vadd.f32 0.0, %v211
    %v213 = vpop.f32.mrf.mxu0
    %214 = vmatprep.mubr.f32.mxu0 0.0
    %215 = vmatmul.mubr.f32.gmra.mxu0 %v82
    %v216 = vpop.f32.mrf.mxu0
    %v217 = vadd.f32 0.0, %v216
    %v218 = vpop.f32.mrf.mxu0
    %219 = vmatprep.mubr.f32.mxu0 0.0
    %220 = vmatmul.mubr.f32.gmra.mxu0 %v83
    %v221 = vpop.f32.mrf.mxu0
    %v222 = vadd.f32 0.0, %v221
    %v223 = vpop.f32.mrf.mxu0
    %224 = vmatprep.mubr.f32.mxu0 0.0
    %225 = vmatmul.mubr.f32.gmra.mxu0 %v84
    %v226 = vpop.f32.mrf.mxu0
    %v227 = vadd.f32 0.0, %v226
    %v228 = vpop.f32.mrf.mxu0
    %229 = vmatprep.mubr.f32.mxu0 0.0
    %230 = vmatmul.mubr.f32.gmra.mxu0 %v85
    %v231 = vpop.f32.mrf.mxu0
    %v232 = vadd.f32 0.0, %v231
    %v233 = vpop.f32.mrf.mxu0
    %234 = vmatprep.mubr.f32.mxu0 0.0
    %235 = vmatmul.mubr.f32.gmra.mxu0 %v86
    %v236 = vpop.f32.mrf.mxu0
    %v237 = vadd.f32 0.0, %v236
    %v238 = vpop.f32.mrf.mxu0
    %239 = vmatprep.mubr.f32.mxu0 0.0
    %240 = vmatmul.mubr.f32.gmra.mxu0 %v87
    %v241 = vpop.f32.mrf.mxu0
    %v242 = vadd.f32 0.0, %v241
    %v243 = vpop.f32.mrf.mxu0
    %244 = vmatprep.mubr.f32.mxu0 0.0
    %245 = vmatmul.mubr.f32.gmra.mxu0 %v88
    %v246 = vpop.f32.mrf.mxu0
    %v247 = vadd.f32 0.0, %v246
    %v248 = vpop.f32.mrf.mxu0
    %249 = vmatprep.mubr.f32.mxu0 0.0
    %250 = vmatmul.mubr.f32.gmra.mxu0 %v89
    %v251 = vpop.f32.mrf.mxu0
    %v252 = vadd.f32 0.0, %v251
    %v253 = vpop.f32.mrf.mxu0
    %254 = vmatprep.mubr.f32.mxu0 0.0
    %255 = vmatmul.mubr.f32.gmra.mxu0 %v90
    %v256 = vpop.f32.mrf.mxu0
    %v257 = vadd.f32 0.0, %v256
    %v258 = vpop.f32.mrf.mxu0
    %259 = vmatprep.mubr.f32.mxu0 0.0
    %260 = vmatmul.mubr.f32.gmra.mxu0 %v91
    %v261 = vpop.f32.mrf.mxu0
    %v262 = vadd.f32 0.0, %v261
    %v263 = vpop.f32.mrf.mxu0
    %264 = vmatprep.mubr.f32.mxu0 0.0
    %265 = vmatmul.mubr.f32.gmra.mxu0 %v92
    %v266 = vpop.f32.mrf.mxu0
    %v267 = vadd.f32 0.0, %v266
    %v268 = vpop.f32.mrf.mxu0
    %269 = vmatprep.mubr.f32.mxu0 0.0
    %270 = vmatmul.mubr.f32.gmra.mxu0 %v93
    %v271 = vpop.f32.mrf.mxu0
    %v272 = vadd.f32 0.0, %v271
    %v273 = vpop.f32.mrf.mxu0
    %274 = vmatprep.mubr.f32.mxu0 0.0
    %275 = vmatmul.mubr.f32.gmra.mxu0 %v94
    %v276 = vpop.f32.mrf.mxu0
    %v277 = vadd.f32 0.0, %v276
    %v278 = vpop.f32.mrf.mxu0
    %279 = vmatprep.mubr.f32.mxu0 0.0
    %280 = vmatmul.mubr.f32.gmra.mxu0 %v95
    %v281 = vpop.f32.mrf.mxu0
    %v282 = vadd.f32 0.0, %v281
    %v283 = vpop.f32.mrf.mxu0
    %284 = vmatprep.mubr.f32.mxu0 0.0
    %285 = vmatmul.mubr.f32.gmra.mxu0 %v96
    %v286 = vpop.f32.mrf.mxu0
    %v287 = vadd.f32 0.0, %v286
    %v288 = vpop.f32.mrf.mxu0
    %289 = vmatprep.mubr.f32.mxu0 0.0
    %290 = vmatmul.mubr.f32.gmra.mxu0 %v97
    %v291 = vpop.f32.mrf.mxu0
    %v292 = vadd.f32 0.0, %v291
    %v293 = vpop.f32.mrf.mxu0
    %294 = vmatprep.mubr.f32.mxu0 0.0
    %295 = vmatmul.mubr.f32.gmra.mxu0 %v98
    %v296 = vpop.f32.mrf.mxu0
    %v297 = vadd.f32 0.0, %v296
    %v298 = vpop.f32.mrf.mxu0
    %299 = vmatprep.mubr.f32.mxu0 0.0
    %300 = vmatmul.mubr.f32.gmra.mxu0 %v99
    %v301 = vpop.f32.mrf.mxu0
    %v302 = vadd.f32 0.0, %v301
    %v303 = vpop.f32.mrf.mxu0
    %304 = vmatprep.mubr.f32.mxu0 0.0
    %305 = vmatmul.mubr.f32.gmra.mxu0 %v100
    %v306 = vpop.f32.mrf.mxu0
    %v307 = vadd.f32 0.0, %v306
    %v308 = vpop.f32.mrf.mxu0
    %309 = vmatprep.mubr.f32.mxu0 0.0
    %310 = vmatmul.mubr.f32.gmra.mxu0 %v101
    %v311 = vpop.f32.mrf.mxu0
    %v312 = vadd.f32 0.0, %v311
    %v313 = vpop.f32.mrf.mxu0
    %314 = vmatprep.mubr.f32.mxu0 0.0
    %315 = vmatmul.mubr.f32.gmra.mxu0 %v102
    %v316 = vpop.f32.mrf.mxu0
    %v317 = vadd.f32 0.0, %v316
    %v318 = vpop.f32.mrf.mxu0
    %319 = vmatprep.mubr.f32.mxu0 0.0
    %320 = vmatmul.mubr.f32.gmra.mxu0 %v103
    %v321 = vpop.f32.mrf.mxu0
    %v322 = vadd.f32 0.0, %v321
    %v323 = vpop.f32.mrf.mxu0
    %324 = vmatprep.mubr.f32.mxu0 0.0
    %325 = vmatmul.mubr.f32.gmra.mxu0 %v104
    %v326 = vpop.f32.mrf.mxu0
    %v327 = vadd.f32 0.0, %v326
    %v328 = vpop.f32.mrf.mxu0
    %329 = vmatprep.mubr.f32.mxu0 0.0
    %330 = vmatmul.mubr.f32.gmra.mxu0 %v105
    %v331 = vpop.f32.mrf.mxu0
    %v332 = vadd.f32 0.0, %v331
    %v333 = vpop.f32.mrf.mxu0
    %334 = vmatprep.mubr.f32.mxu0 0.0
    %335 = vmatmul.mubr.f32.gmra.mxu0 %v106
    %v336 = vpop.f32.mrf.mxu0
    %v337 = vadd.f32 0.0, %v336
    %v338 = vpop.f32.mrf.mxu0
    %339 = vmatprep.mubr.f32.mxu0 0.0
    %340 = vmatmul.mubr.f32.gmra.mxu0 %v107
    %v341 = vpop.f32.mrf.mxu0
    %v342 = vadd.f32 0.0, %v341
    %v343 = vpop.f32.mrf.mxu0
    %344 = vmatprep.mubr.f32.mxu0 0.0
    %345 = vmatmul.mubr.f32.gmra.mxu0 %v108
    %v346 = vpop.f32.mrf.mxu0
    %v347 = vadd.f32 0.0, %v346
    %v348 = vpop.f32.mrf.mxu0
    %349 = vdwg.mxu0
    %v350 = vld [vmem:[#allocation5] sm:$0x3]
    %v351 = vld [vmem:[#allocation8] sm:$0xff]
    %v352 = vld [vmem:[#allocation8 + $0x8] sm:$0xff]
    %v353 = vld [vmem:[#allocation8 + $0x10] sm:$0xff]
    %v354 = vld [vmem:[#allocation8 + $0x18] sm:$0xff]
    %v355 = vld [vmem:[#allocation8 + $0x20] sm:$0xff]
    %v356 = vld [vmem:[#allocation8 + $0x28] sm:$0xff]
    %v357 = vld [vmem:[#allocation8 + $0x30] sm:$0xff]
    %v358 = vld [vmem:[#allocation8 + $0x38] sm:$0xff]
    %v359 = vld [vmem:[#allocation8 + $0x40] sm:$0xff]
    %v360 = vld [vmem:[#allocation8 + $0x48] sm:$0xff]
    %v361 = vld [vmem:[#allocation8 + $0x50] sm:$0xff]
    %v362 = vld [vmem:[#allocation8 + $0x58] sm:$0xff]
    %v363 = vld [vmem:[#allocation8 + $0x60] sm:$0xff]
    %v364 = vld [vmem:[#allocation8 + $0x68] sm:$0xff]
    %v365 = vld [vmem:[#allocation8 + $0x70] sm:$0xff]
    %v366 = vld [vmem:[#allocation8 + $0x78] sm:$0xff]
    %367 = vmatprep.subr.mxu0 0.0
    %368 = vmatpush1.msra.mxu0 %v366
    %369 = vmatprep.subr.mxu0 0.0
    %370 = vmatpush1.msra.mxu0 %v365
    %371 = vmatprep.subr.mxu0 0.0
    %372 = vmatpush1.msra.mxu0 %v364
    %373 = vmatprep.subr.mxu0 0.0
    %374 = vmatpush1.msra.mxu0 %v363
    %375 = vmatprep.subr.mxu0 0.0
    %376 = vmatpush1.msra.mxu0 %v362
    %377 = vmatprep.subr.mxu0 0.0
    %378 = vmatpush1.msra.mxu0 %v361
    %379 = vmatprep.subr.mxu0 0.0
    %380 = vmatpush1.msra.mxu0 %v360
    %381 = vmatprep.subr.mxu0 0.0
    %382 = vmatpush1.msra.mxu0 %v359
    %383 = vmatprep.subr.mxu0 0.0
    %384 = vmatpush1.msra.mxu0 %v358
    %385 = vmatprep.subr.mxu0 0.0
    %386 = vmatpush1.msra.mxu0 %v357
    %387 = vmatprep.subr.mxu0 0.0
    %388 = vmatpush1.msra.mxu0 %v356
    %389 = vmatprep.subr.mxu0 0.0
    %390 = vmatpush1.msra.mxu0 %v355
    %391 = vmatprep.subr.mxu0 0.0
    %392 = vmatpush1.msra.mxu0 %v354
    %393 = vmatprep.subr.mxu0 0.0
    %394 = vmatpush1.msra.mxu0 %v353
    %395 = vmatprep.subr.mxu0 0.0
    %396 = vmatpush1.msra.mxu0 %v352
    %397 = vmatprep.subr.mxu0 0.0
    %398 = vmatpush1.msra.mxu0 %v351
    %399 = vmatprep.subr.mxu0 0.0
    %400 = vmatpush2.msra.mxu0 0.0
    %401 = vmatprep.subr.mxu0 0.0
    %402 = vmatpush2.msra.mxu0 0.0
    %403 = vmatprep.subr.mxu0 0.0
    %404 = vmatpush2.msra.mxu0 0.0
    %405 = vmatprep.subr.mxu0 0.0
    %406 = vmatpush2.msra.mxu0 0.0
    %407 = vmatprep.subr.mxu0 0.0
    %408 = vmatpush2.msra.mxu0 0.0
    %409 = vmatprep.subr.mxu0 0.0
    %410 = vmatpush2.msra.mxu0 0.0
    %411 = vmatprep.subr.mxu0 0.0
    %412 = vmatpush2.msra.mxu0 0.0
    %413 = vmatprep.subr.mxu0 0.0
    %414 = vmatpush2.msra.mxu0 0.0
    %415 = vmatprep.subr.mxu0 0.0
    %416 = vmatpush2.msra.mxu0 0.0
    %417 = vmatprep.subr.mxu0 0.0
    %418 = vmatpush2.msra.mxu0 0.0
    %419 = vmatprep.subr.mxu0 0.0
    %420 = vmatpush2.msra.mxu0 0.0
    %421 = vmatprep.subr.mxu0 0.0
    %422 = vmatpush2.msra.mxu0 0.0
    %423 = vmatprep.subr.mxu0 0.0
    %424 = vmatpush2.msra.mxu0 0.0
    %425 = vmatprep.subr.mxu0 0.0
    %426 = vmatpush2.msra.mxu0 0.0
    %427 = vmatprep.subr.mxu0 0.0
    %428 = vmatpush2.msra.mxu0 0.0
    %429 = vmatprep.subr.mxu0 0.0
    %430 = vmatpush2.msra.mxu0 0.0
    %431 = vmatprep.mubr.f32.mxu0 0.0
    %432 = vmatmul.mubr.f32.gmra.mxu0 %v350
    %v433 = vpop.f32.mrf.mxu0
    %v434 = vadd.f32 0.0, %v433
    %v435 = vpop.f32.mrf.mxu0
    %436 = vdwg.mxu0
    %v439 = vunpack.c.l.s4 1966171168
    %v440 = vunpack.c.0.s8 %v439
    %v441 = vlaneseq
    %v442 = vshrl.u32 %v441, 7
    %v443 = vsub.s32 %v440, %v442
    %v444 = vrot.slane %v434, %v443
    %v445 = vcombine.high %v444, %v444
    %v447 = vunpack.c.l.s4 1966171168
    %v448 = vunpack.c.0.s8 %v447
    %v449 = vlaneseq
    %v450 = vshrl.u32 %v449, 7
    %v451 = vsub.s32 %v448, %v450
    %v452 = vrot.slane %v444, %v451
    %v454 = vunpack.c.l.s4 1966171168
    %v455 = vunpack.c.0.s8 %v454
    %v456 = vlaneseq
    %v457 = vshrl.u32 %v456, 7
    %v458 = vsub.s32 %v455, %v457
    %v459 = vrot.slane %v445, %v458
    %v460 = vlaneseq
    %v461 = vshrl.u32 %v460, 7
    %v462 = vsub.s32 0, %v461
    %v463 = vrot.slane %v452, %v462
    %v464 = vlaneseq
    %v465 = vshrl.u32 %v464, 7
    %v466 = vsub.s32 0, %v465
    %v467 = vrot.slane %v459, %v466
    %v470 = vadd.f32 %v192, %v463
    %v471 = vadd.f32 %v197, %v463
    %v472 = vadd.f32 %v202, %v463
    %v473 = vadd.f32 %v207, %v463
    %v474 = vadd.f32 %v212, %v463
    %v475 = vadd.f32 %v217, %v463
    %v476 = vadd.f32 %v222, %v463
    %v477 = vadd.f32 %v227, %v463
    %v478 = vadd.f32 %v232, %v463
    %v479 = vadd.f32 %v237, %v463
    %v480 = vadd.f32 %v242, %v463
    %v481 = vadd.f32 %v247, %v463
    %v482 = vadd.f32 %v252, %v463
    %v483 = vadd.f32 %v257, %v463
    %v484 = vadd.f32 %v262, %v463
    %v485 = vadd.f32 %v267, %v463
    %v486 = vadd.f32 %v272, %v467
    %v487 = vadd.f32 %v277, %v467
    %v488 = vadd.f32 %v282, %v467
    %v489 = vadd.f32 %v287, %v467
    %v490 = vadd.f32 %v292, %v467
    %v491 = vadd.f32 %v297, %v467
    %v492 = vadd.f32 %v302, %v467
    %v493 = vadd.f32 %v307, %v467
    %v494 = vadd.f32 %v312, %v467
    %v495 = vadd.f32 %v317, %v467
    %v496 = vadd.f32 %v322, %v467
    %v497 = vadd.f32 %v327, %v467
    %v498 = vadd.f32 %v332, %v467
    %v499 = vadd.f32 %v337, %v467
    %v500 = vadd.f32 %v342, %v467
    %v501 = vadd.f32 %v347, %v467
    %v502 = vtanh.pop %v470
    %v503 = vtanh.pop %v471
    %v504 = vtanh.pop %v472
    %v505 = vtanh.pop %v473
    %v506 = vtanh.pop %v474
    %v507 = vtanh.pop %v475
    %v508 = vtanh.pop %v476
    %v509 = vtanh.pop %v477
    %v510 = vtanh.pop %v478
    %v511 = vtanh.pop %v479
    %v512 = vtanh.pop %v480
    %v513 = vtanh.pop %v481
    %v514 = vtanh.pop %v482
    %v515 = vtanh.pop %v483
    %v516 = vtanh.pop %v484
    %v517 = vtanh.pop %v485
    %v518 = vtanh.pop %v486
    %v519 = vtanh.pop %v487
    %v520 = vtanh.pop %v488
    %v521 = vtanh.pop %v489
    %v522 = vtanh.pop %v490
    %v523 = vtanh.pop %v491
    %v524 = vtanh.pop %v492
    %v525 = vtanh.pop %v493
    %v526 = vtanh.pop %v494
    %v527 = vtanh.pop %v495
    %v528 = vtanh.pop %v496
    %v529 = vtanh.pop %v497
    %v530 = vtanh.pop %v498
    %v531 = vtanh.pop %v499
    %v532 = vtanh.pop %v500
    %v533 = vtanh.pop %v501
    %v534 = vld [vmem:[%s4] sm:$0x1]
    %v536 = vlaneseq
    %v537 = vshrl.u32 %v536, 7
    %v538 = vsub.s32 0, %v537
    %v539 = vrot.slane %v534, %v538
    %v541 = vmul.f32 %v502, %v539
    %v542 = vmul.f32 %v503, %v539
    %v543 = vmul.f32 %v504, %v539
    %v544 = vmul.f32 %v505, %v539
    %v545 = vmul.f32 %v506, %v539
    %v546 = vmul.f32 %v507, %v539
    %v547 = vmul.f32 %v508, %v539
    %v548 = vmul.f32 %v509, %v539
    %v549 = vmul.f32 %v510, %v539
    %v550 = vmul.f32 %v511, %v539
    %v551 = vmul.f32 %v512, %v539
    %v552 = vmul.f32 %v513, %v539
    %v553 = vmul.f32 %v514, %v539
    %v554 = vmul.f32 %v515, %v539
    %v555 = vmul.f32 %v516, %v539
    %v556 = vmul.f32 %v517, %v539
    %v557 = vmul.f32 %v518, %v539
    %v558 = vmul.f32 %v519, %v539
    %v559 = vmul.f32 %v520, %v539
    %v560 = vmul.f32 %v521, %v539
    %v561 = vmul.f32 %v522, %v539
    %v562 = vmul.f32 %v523, %v539
    %v563 = vmul.f32 %v524, %v539
    %v564 = vmul.f32 %v525, %v539
    %v565 = vmul.f32 %v526, %v539
    %v566 = vmul.f32 %v527, %v539
    %v567 = vmul.f32 %v528, %v539
    %v568 = vmul.f32 %v529, %v539
    %v569 = vmul.f32 %v530, %v539
    %v570 = vmul.f32 %v531, %v539
    %v571 = vmul.f32 %v532, %v539
    %v572 = vmul.f32 %v533, %v539
    %573 = vadd.xlane.f32.xlu0 %v541
    %v574 = vpop.xlane.xlu0 %573
    %575 = vadd.xlane.f32.xlu0 %v542
    %v576 = vpop.xlane.xlu0 %575
    %577 = vadd.xlane.f32.xlu0 %v543
    %v578 = vpop.xlane.xlu0 %577
    %579 = vadd.xlane.f32.xlu0 %v544
    %v580 = vpop.xlane.xlu0 %579
    %581 = vadd.xlane.f32.xlu0 %v545
    %v582 = vpop.xlane.xlu0 %581
    %583 = vadd.xlane.f32.xlu0 %v546
    %v584 = vpop.xlane.xlu0 %583
    %585 = vadd.xlane.f32.xlu0 %v547
    %v586 = vpop.xlane.xlu0 %585
    %587 = vadd.xlane.f32.xlu0 %v548
    %v588 = vpop.xlane.xlu0 %587
    %589 = vadd.xlane.f32.xlu0 %v549
    %v590 = vpop.xlane.xlu0 %589
    %591 = vadd.xlane.f32.xlu0 %v550
    %v592 = vpop.xlane.xlu0 %591
    %593 = vadd.xlane.f32.xlu0 %v551
    %v594 = vpop.xlane.xlu0 %593
    %595 = vadd.xlane.f32.xlu0 %v552
    %v596 = vpop.xlane.xlu0 %595
    %597 = vadd.xlane.f32.xlu0 %v553
    %v598 = vpop.xlane.xlu0 %597
    %599 = vadd.xlane.f32.xlu0 %v554
    %v600 = vpop.xlane.xlu0 %599
    %601 = vadd.xlane.f32.xlu0 %v555
    %v602 = vpop.xlane.xlu0 %601
    %603 = vadd.xlane.f32.xlu0 %v556
    %v604 = vpop.xlane.xlu0 %603
    %605 = vadd.xlane.f32.xlu0 %v557
    %v606 = vpop.xlane.xlu0 %605
    %607 = vadd.xlane.f32.xlu0 %v558
    %v608 = vpop.xlane.xlu0 %607
    %609 = vadd.xlane.f32.xlu0 %v559
    %v610 = vpop.xlane.xlu0 %609
    %611 = vadd.xlane.f32.xlu0 %v560
    %v612 = vpop.xlane.xlu0 %611
    %613 = vadd.xlane.f32.xlu0 %v561
    %v614 = vpop.xlane.xlu0 %613
    %615 = vadd.xlane.f32.xlu0 %v562
    %v616 = vpop.xlane.xlu0 %615
    %617 = vadd.xlane.f32.xlu0 %v563
    %v618 = vpop.xlane.xlu0 %617
    %619 = vadd.xlane.f32.xlu0 %v564
    %v620 = vpop.xlane.xlu0 %619
    %621 = vadd.xlane.f32.xlu0 %v565
    %v622 = vpop.xlane.xlu0 %621
    %623 = vadd.xlane.f32.xlu0 %v566
    %v624 = vpop.xlane.xlu0 %623
    %625 = vadd.xlane.f32.xlu0 %v567
    %v626 = vpop.xlane.xlu0 %625
    %627 = vadd.xlane.f32.xlu0 %v568
    %v628 = vpop.xlane.xlu0 %627
    %629 = vadd.xlane.f32.xlu0 %v569
    %v630 = vpop.xlane.xlu0 %629
    %631 = vadd.xlane.f32.xlu0 %v570
    %v632 = vpop.xlane.xlu0 %631
    %633 = vadd.xlane.f32.xlu0 %v571
    %v634 = vpop.xlane.xlu0 %633
    %635 = vadd.xlane.f32.xlu0 %v572
    %v636 = vpop.xlane.xlu0 %635
    %v669 = vlaneseq
    %v670 = vand.u32 %v669, 127
    %v671 = vlaneseq
    %v672 = vshrl.u32 %v671, 7
    %v673 = vsub.s32 %v670, %v672
    %v674 = vrot.slane %v574, %v673
    %v675 = vadd.s32 %v670, 4294967288
    %v676 = vlaneseq
    %v677 = vshrl.u32 %v676, 7
    %v678 = vsub.s32 %v675, %v677
    %v679 = vrot.slane %v576, %v678
    %vm680 = vcmask 130112
    %v681 = vsel %vm680, %v679, %v674
    %v682 = vadd.s32 %v670, 4294967280
    %v683 = vlaneseq
    %v684 = vshrl.u32 %v683, 7
    %v685 = vsub.s32 %v682, %v684
    %v686 = vrot.slane %v578, %v685
    %vm687 = vcmask 195712
    %v688 = vsel %vm687, %v686, %v681
    %v689 = vadd.s32 %v670, 4294967272
    %v690 = vlaneseq
    %v691 = vshrl.u32 %v690, 7
    %v692 = vsub.s32 %v689, %v691
    %v693 = vrot.slane %v580, %v692
    %vm694 = vcmask 261312
    %v695 = vsel %vm694, %v693, %v688
    %v696 = vadd.s32 %v670, 4294967264
    %v697 = vlaneseq
    %v698 = vshrl.u32 %v697, 7
    %v699 = vsub.s32 %v696, %v698
    %v700 = vrot.slane %v582, %v699
    %vm701 = vcmask 326912
    %v702 = vsel %vm701, %v700, %v695
    %v703 = vadd.s32 %v670, 4294967256
    %v704 = vlaneseq
    %v705 = vshrl.u32 %v704, 7
    %v706 = vsub.s32 %v703, %v705
    %v707 = vrot.slane %v584, %v706
    %vm708 = vcmask 392512
    %v709 = vsel %vm708, %v707, %v702
    %v710 = vadd.s32 %v670, 4294967248
    %v711 = vlaneseq
    %v712 = vshrl.u32 %v711, 7
    %v713 = vsub.s32 %v710, %v712
    %v714 = vrot.slane %v586, %v713
    %vm715 = vcmask 458112
    %v716 = vsel %vm715, %v714, %v709
    %v717 = vadd.s32 %v670, 4294967240
    %v718 = vlaneseq
    %v719 = vshrl.u32 %v718, 7
    %v720 = vsub.s32 %v717, %v719
    %v721 = vrot.slane %v588, %v720
    %vm722 = vcmask 523712
    %v723 = vsel %vm722, %v721, %v716
    %v724 = vadd.s32 %v670, 4294967232
    %v725 = vlaneseq
    %v726 = vshrl.u32 %v725, 7
    %v727 = vsub.s32 %v724, %v726
    %v728 = vrot.slane %v590, %v727
    %vm729 = vcmask 589312
    %v730 = vsel %vm729, %v728, %v723
    %v731 = vadd.s32 %v670, 4294967224
    %v732 = vlaneseq
    %v733 = vshrl.u32 %v732, 7
    %v734 = vsub.s32 %v731, %v733
    %v735 = vrot.slane %v592, %v734
    %vm736 = vcmask 654912
    %v737 = vsel %vm736, %v735, %v730
    %v738 = vadd.s32 %v670, 4294967216
    %v739 = vlaneseq
    %v740 = vshrl.u32 %v739, 7
    %v741 = vsub.s32 %v738, %v740
    %v742 = vrot.slane %v594, %v741
    %vm743 = vcmask 720512
    %v744 = vsel %vm743, %v742, %v737
    %v745 = vadd.s32 %v670, 4294967208
    %v746 = vlaneseq
    %v747 = vshrl.u32 %v746, 7
    %v748 = vsub.s32 %v745, %v747
    %v749 = vrot.slane %v596, %v748
    %vm750 = vcmask 786112
    %v751 = vsel %vm750, %v749, %v744
    %v752 = vadd.s32 %v670, 4294967200
    %v753 = vlaneseq
    %v754 = vshrl.u32 %v753, 7
    %v755 = vsub.s32 %v752, %v754
    %v756 = vrot.slane %v598, %v755
    %vm757 = vcmask 851712
    %v758 = vsel %vm757, %v756, %v751
    %v759 = vadd.s32 %v670, 4294967192
    %v760 = vlaneseq
    %v761 = vshrl.u32 %v760, 7
    %v762 = vsub.s32 %v759, %v761
    %v763 = vrot.slane %v600, %v762
    %vm764 = vcmask 917312
    %v765 = vsel %vm764, %v763, %v758
    %v766 = vadd.s32 %v670, 4294967184
    %v767 = vlaneseq
    %v768 = vshrl.u32 %v767, 7
    %v769 = vsub.s32 %v766, %v768
    %v770 = vrot.slane %v602, %v769
    %vm771 = vcmask 982912
    %v772 = vsel %vm771, %v770, %v765
    %v773 = vadd.s32 %v670, 4294967176
    %v774 = vlaneseq
    %v775 = vshrl.u32 %v774, 7
    %v776 = vsub.s32 %v773, %v775
    %v777 = vrot.slane %v604, %v776
    %vm778 = vcmask 1048512
    %v779 = vsel %vm778, %v777, %v772
    %v780 = vlaneseq
    %v781 = vshrl.u32 %v780, 7
    %v782 = vsub.s32 %v670, %v781
    %v783 = vrot.slane %v606, %v782
    %v784 = vlaneseq
    %v785 = vshrl.u32 %v784, 7
    %v786 = vsub.s32 %v675, %v785
    %v787 = vrot.slane %v608, %v786
    %v788 = vsel %vm680, %v787, %v783
    %v789 = vlaneseq
    %v790 = vshrl.u32 %v789, 7
    %v791 = vsub.s32 %v682, %v790
    %v792 = vrot.slane %v610, %v791
    %v793 = vsel %vm687, %v792, %v788
    %v794 = vlaneseq
    %v795 = vshrl.u32 %v794, 7
    %v796 = vsub.s32 %v689, %v795
    %v797 = vrot.slane %v612, %v796
    %v798 = vsel %vm694, %v797, %v793
    %v799 = vlaneseq
    %v800 = vshrl.u32 %v799, 7
    %v801 = vsub.s32 %v696, %v800
    %v802 = vrot.slane %v614, %v801
    %v803 = vsel %vm701, %v802, %v798
    %v804 = vlaneseq
    %v805 = vshrl.u32 %v804, 7
    %v806 = vsub.s32 %v703, %v805
    %v807 = vrot.slane %v616, %v806
    %v808 = vsel %vm708, %v807, %v803
    %v809 = vlaneseq
    %v810 = vshrl.u32 %v809, 7
    %v811 = vsub.s32 %v710, %v810
    %v812 = vrot.slane %v618, %v811
    %v813 = vsel %vm715, %v812, %v808
    %v814 = vlaneseq
    %v815 = vshrl.u32 %v814, 7
    %v816 = vsub.s32 %v717, %v815
    %v817 = vrot.slane %v620, %v816
    %v818 = vsel %vm722, %v817, %v813
    %v819 = vlaneseq
    %v820 = vshrl.u32 %v819, 7
    %v821 = vsub.s32 %v724, %v820
    %v822 = vrot.slane %v622, %v821
    %v823 = vsel %vm729, %v822, %v818
    %v824 = vlaneseq
    %v825 = vshrl.u32 %v824, 7
    %v826 = vsub.s32 %v731, %v825
    %v827 = vrot.slane %v624, %v826
    %v828 = vsel %vm736, %v827, %v823
    %v829 = vlaneseq
    %v830 = vshrl.u32 %v829, 7
    %v831 = vsub.s32 %v738, %v830
    %v832 = vrot.slane %v626, %v831
    %v833 = vsel %vm743, %v832, %v828
    %v834 = vlaneseq
    %v835 = vshrl.u32 %v834, 7
    %v836 = vsub.s32 %v745, %v835
    %v837 = vrot.slane %v628, %v836
    %v838 = vsel %vm750, %v837, %v833
    %v839 = vlaneseq
    %v840 = vshrl.u32 %v839, 7
    %v841 = vsub.s32 %v752, %v840
    %v842 = vrot.slane %v630, %v841
    %v843 = vsel %vm757, %v842, %v838
    %v844 = vlaneseq
    %v845 = vshrl.u32 %v844, 7
    %v846 = vsub.s32 %v759, %v845
    %v847 = vrot.slane %v632, %v846
    %v848 = vsel %vm764, %v847, %v843
    %v849 = vlaneseq
    %v850 = vshrl.u32 %v849, 7
    %v851 = vsub.s32 %v766, %v850
    %v852 = vrot.slane %v634, %v851
    %v853 = vsel %vm771, %v852, %v848
    %v854 = vlaneseq
    %v855 = vshrl.u32 %v854, 7
    %v856 = vsub.s32 %v773, %v855
    %v857 = vrot.slane %v636, %v856
    %v858 = vsel %vm778, %v857, %v853
    %vm859 = vcmask 1041409
    %v860 = vsel %vm859, %v858, %v779
    %862 = vst [vmem:[#allocation11] sm:$0x3] %v860
    %vm863 = vcmp.lt.s32.totalorder %v670, 8
    %v864 = vsel %vm863, %v860, -1e+30
    %vm865 = vcmask 1041408
    %v866 = vsel %vm865, %v864, -inf
    %867 = vmax.xlane.f32.xlu0 %v866
    %v868 = vpop.xlane.xlu0 %867
    %v869 = vsub.f32 %v864, %v868
    %v870 = vmul.f32 %v869, 1.442695
    %v871 = vpow.pop %v870
    %v872 = vsel %vm865, %v871, 0.0
    %873 = vadd.xlane.f32.xlu0 %v872
    %v874 = vpop.xlane.xlu0 %873
    %v875 = vrcp.pop %v874
    %v876 = vmul.f32 %v871, %v875
    %v879 = vunpack.c.l.s4 1966171168
    %v880 = vunpack.c.0.s8 %v879
    %v881 = vlaneseq
    %v882 = vshrl.u32 %v881, 7
    %v883 = vsub.s32 %v880, %v882
    %v884 = vrot.slane %v876, %v883
    %v885 = vcombine.high %v884, %v884
    %v887 = vunpack.c.l.s4 1966171168
    %v888 = vunpack.c.0.s8 %v887
    %v889 = vlaneseq
    %v890 = vshrl.u32 %v889, 7
    %v891 = vsub.s32 %v888, %v890
    %v892 = vrot.slane %v884, %v891
    %v894 = vunpack.c.l.s4 1966171168
    %v895 = vunpack.c.0.s8 %v894
    %v896 = vlaneseq
    %v897 = vshrl.u32 %v896, 7
    %v898 = vsub.s32 %v895, %v897
    %v899 = vrot.slane %v885, %v898
    %902 = vmatprep.subr.mxu0 0.0
    %903 = vmatpush1.msra.mxu0 %v92
    %904 = vmatprep.subr.mxu0 0.0
    %905 = vmatpush1.msra.mxu0 %v91
    %906 = vmatprep.subr.mxu0 0.0
    %907 = vmatpush1.msra.mxu0 %v90
    %908 = vmatprep.subr.mxu0 0.0
    %909 = vmatpush1.msra.mxu0 %v89
    %910 = vmatprep.subr.mxu0 0.0
    %911 = vmatpush1.msra.mxu0 %v88
    %912 = vmatprep.subr.mxu0 0.0
    %913 = vmatpush1.msra.mxu0 %v87
    %914 = vmatprep.subr.mxu0 0.0
    %915 = vmatpush1.msra.mxu0 %v86
    %916 = vmatprep.subr.mxu0 0.0
    %917 = vmatpush1.msra.mxu0 %v85
    %918 = vmatprep.subr.mxu0 0.0
    %919 = vmatpush1.msra.mxu0 %v84
    %920 = vmatprep.subr.mxu0 0.0
    %921 = vmatpush1.msra.mxu0 %v83
    %922 = vmatprep.subr.mxu0 0.0
    %923 = vmatpush1.msra.mxu0 %v82
    %924 = vmatprep.subr.mxu0 0.0
    %925 = vmatpush1.msra.mxu0 %v81
    %926 = vmatprep.subr.mxu0 0.0
    %927 = vmatpush1.msra.mxu0 %v80
    %928 = vmatprep.subr.mxu0 0.0
    %929 = vmatpush1.msra.mxu0 %v79
    %930 = vmatprep.subr.mxu0 0.0
    %931 = vmatpush1.msra.mxu0 %v78
    %932 = vmatprep.subr.mxu0 0.0
    %933 = vmatpush1.msra.mxu0 %v77
    %934 = vmatprep.subr.mxu0 0.0
    %935 = vmatpush2.msra.mxu0 0.0
    %936 = vmatprep.subr.mxu0 0.0
    %937 = vmatpush2.msra.mxu0 0.0
    %938 = vmatprep.subr.mxu0 0.0
    %939 = vmatpush2.msra.mxu0 0.0
    %940 = vmatprep.subr.mxu0 0.0
    %941 = vmatpush2.msra.mxu0 0.0
    %942 = vmatprep.subr.mxu0 0.0
    %943 = vmatpush2.msra.mxu0 0.0
    %944 = vmatprep.subr.mxu0 0.0
    %945 = vmatpush2.msra.mxu0 0.0
    %946 = vmatprep.subr.mxu0 0.0
    %947 = vmatpush2.msra.mxu0 0.0
    %948 = vmatprep.subr.mxu0 0.0
    %949 = vmatpush2.msra.mxu0 0.0
    %950 = vmatprep.subr.mxu0 0.0
    %951 = vmatpush2.msra.mxu0 0.0
    %952 = vmatprep.subr.mxu0 0.0
    %953 = vmatpush2.msra.mxu0 0.0
    %954 = vmatprep.subr.mxu0 0.0
    %955 = vmatpush2.msra.mxu0 0.0
    %956 = vmatprep.subr.mxu0 0.0
    %957 = vmatpush2.msra.mxu0 0.0
    %958 = vmatprep.subr.mxu0 0.0
    %959 = vmatpush2.msra.mxu0 0.0
    %960 = vmatprep.subr.mxu0 0.0
    %961 = vmatpush2.msra.mxu0 0.0
    %962 = vmatprep.subr.mxu0 0.0
    %963 = vmatpush2.msra.mxu0 0.0
    %964 = vmatprep.subr.mxu0 0.0
    %965 = vmatpush2.msra.mxu0 0.0
    %966 = vmatprep.mubr.f32.mxu0 0.0
    %967 = vmatmul.mubr.f32.gmra.mxu0 %v892
    %v968 = vpop.f32.mrf.mxu0
    %v969 = vadd.f32 0.0, %v968
    %v970 = vpop.f32.mrf.mxu0
    %971 = vdwg.mxu0
    %972 = vmatprep.subr.mxu0 0.0
    %973 = vmatpush1.msra.mxu0 %v108
    %974 = vmatprep.subr.mxu0 0.0
    %975 = vmatpush1.msra.mxu0 %v107
    %976 = vmatprep.subr.mxu0 0.0
    %977 = vmatpush1.msra.mxu0 %v106
    %978 = vmatprep.subr.mxu0 0.0
    %979 = vmatpush1.msra.mxu0 %v105
    %980 = vmatprep.subr.mxu0 0.0
    %981 = vmatpush1.msra.mxu0 %v104
    %982 = vmatprep.subr.mxu0 0.0
    %983 = vmatpush1.msra.mxu0 %v103
    %984 = vmatprep.subr.mxu0 0.0
    %985 = vmatpush1.msra.mxu0 %v102
    %986 = vmatprep.subr.mxu0 0.0
    %987 = vmatpush1.msra.mxu0 %v101
    %988 = vmatprep.subr.mxu0 0.0
    %989 = vmatpush1.msra.mxu0 %v100
    %990 = vmatprep.subr.mxu0 0.0
    %991 = vmatpush1.msra.mxu0 %v99
    %992 = vmatprep.subr.mxu0 0.0
    %993 = vmatpush1.msra.mxu0 %v98
    %994 = vmatprep.subr.mxu0 0.0
    %995 = vmatpush1.msra.mxu0 %v97
    %996 = vmatprep.subr.mxu0 0.0
    %997 = vmatpush1.msra.mxu0 %v96
    %998 = vmatprep.subr.mxu0 0.0
    %999 = vmatpush1.msra.mxu0 %v95
    %1000 = vmatprep.subr.mxu0 0.0
    %1001 = vmatpush1.msra.mxu0 %v94
    %1002 = vmatprep.subr.mxu0 0.0
    %1003 = vmatpush1.msra.mxu0 %v93
    %1004 = vmatprep.subr.mxu0 0.0
    %1005 = vmatpush2.msra.mxu0 0.0
    %1006 = vmatprep.subr.mxu0 0.0
    %1007 = vmatpush2.msra.mxu0 0.0
    %1008 = vmatprep.subr.mxu0 0.0
    %1009 = vmatpush2.msra.mxu0 0.0
    %1010 = vmatprep.subr.mxu0 0.0
    %1011 = vmatpush2.msra.mxu0 0.0
    %1012 = vmatprep.subr.mxu0 0.0
    %1013 = vmatpush2.msra.mxu0 0.0
    %1014 = vmatprep.subr.mxu0 0.0
    %1015 = vmatpush2.msra.mxu0 0.0
    %1016 = vmatprep.subr.mxu0 0.0
    %1017 = vmatpush2.msra.mxu0 0.0
    %1018 = vmatprep.subr.mxu0 0.0
    %1019 = vmatpush2.msra.mxu0 0.0
    %1020 = vmatprep.subr.mxu0 0.0
    %1021 = vmatpush2.msra.mxu0 0.0
    %1022 = vmatprep.subr.mxu0 0.0
    %1023 = vmatpush2.msra.mxu0 0.0
    %1024 = vmatprep.subr.mxu0 0.0
    %1025 = vmatpush2.msra.mxu0 0.0
    %1026 = vmatprep.subr.mxu0 0.0
    %1027 = vmatpush2.msra.mxu0 0.0
    %1028 = vmatprep.subr.mxu0 0.0
    %1029 = vmatpush2.msra.mxu0 0.0
    %1030 = vmatprep.subr.mxu0 0.0
    %1031 = vmatpush2.msra.mxu0 0.0
    %1032 = vmatprep.subr.mxu0 0.0
    %1033 = vmatpush2.msra.mxu0 0.0
    %1034 = vmatprep.subr.mxu0 0.0
    %1035 = vmatpush2.msra.mxu0 0.0
    %1036 = vmatprep.mubr.f32.mxu0 0.0
    %1037 = vmatmul.mubr.f32.gmra.mxu0 %v899
    %v1038 = vpop.f32.mrf.mxu0
    %v1039 = vadd.f32 0.0, %v1038
    %v1040 = vpop.f32.mrf.mxu0
    %1041 = vdwg.mxu0
    %1042 = vst [vmem:[#allocation10] sm:$0x1] %v969
    %1043 = vst [vmem:[#allocation10 + $0x1] sm:$0x1] %v1039
    // Predicated region
    $region38: #{tpu_custom_call.1} parent=1 // pred_check
      _
    $region39: #{tpu_custom_call.1} parent=1 // pred_check_branch
      %1045 = sbr.rel (0) target = $region41
    $region40: #{tpu_custom_call.1} parent=1 // pred_region
      %s1047 = ssub.s32 32, 32
      %1048 = vsyncadd [#allocation4], %s1047
      %s1049 = sshll.u32 [#allocation10], 4
      %s1050 = int_to_ptr.vmem [resolvable:$true] %s1049
      %1055 = dma.vmem_to_hbm [thread:$0]  %s1050, 32, %s5, [#allocation4], 16, 16, 1
    $region41: #{tpu_custom_call.1} parent=1 // pred_fallthru
      _
    // Predicated region
    $region42: #{tpu_custom_call.1} parent=1 // pred_check
      _
    $region43: #{tpu_custom_call.1} parent=1 // pred_check_branch
      %1057 = sbr.rel (0) target = $region45
    $region44: #{tpu_custom_call.1} parent=1 // pred_region
      %s1059 = ssub.s32 32, 32
      %1060 = vsyncadd [#allocation12], %s1059
      %s1062 = sshll.u32 [#allocation11], 4
      %s1063 = int_to_ptr.vmem [resolvable:$true] %s1062
      %1065 = dma.vmem_to_hbm [thread:$0]  %s1063, 32, %s6, [#allocation12]
    $region45: #{tpu_custom_call.1} parent=1 // pred_fallthru
      _
    // Predicated region
    $region46: #{tpu_custom_call.1} parent=1 // pred_check
      _
    $region47: #{tpu_custom_call.1} parent=1 // pred_check_branch
      %1067 = sbr.rel (0) target = $region49
    $region48: #{tpu_custom_call.1} parent=1 // pred_region
      %1068 = dma.done [#allocation4], 32
    $region49: #{tpu_custom_call.1} parent=1 // pred_fallthru
      _
    // Predicated region
    $region50: #{tpu_custom_call.1} parent=1 // pred_check
      _
    $region51: #{tpu_custom_call.1} parent=1 // pred_check_branch
      %1070 = sbr.rel (0) target = $region53
    $region52: #{tpu_custom_call.1} parent=1 // pred_region
      %1071 = dma.done [#allocation12], 32
    $region53: #{tpu_custom_call.1} parent=1 // pred_fallthru
      _
    %1072 = vsyncpa [#allocation3], 1
    %1073 = vsyncpa [#allocation6], 1
    %1074 = vsyncpa [#allocation9], 1
    %1075 = vsyncpa [#allocation4], 1
    %1076 = vsyncpa [#allocation12], 1

</llo_original>
